<compile_context>
chip_gen: v5e
topology: v5e:2x2
jax: 0.10.0
libtpu: 0.0.40
codegen_flags: <defaults>
</compile_context>

<pallas_src>
import functools

import jax
import jax.numpy as jnp
from jax.experimental import pallas as pl
from jax.experimental.pallas import tpu as pltpu


# ----------------------------------------------------------------------------
# Fused kernel: h = relu(z @ W1^T + b1);  out = sigmoid(deconv2x2(h) + bt)
# ----------------------------------------------------------------------------
def _fused_decoder_kernel(z_ref, w1t_ref, b1_ref, w2_ref, bt_ref, o_ref, *,
                          channels, hw, kk):
    # Hidden layer on the MXU: (B, lod) @ (lod, C*H*W) -> (B, C*H*W), + bias, ReLU.
    h = jnp.dot(z_ref[...], w1t_ref[...], preferred_element_type=jnp.float32)
    h = jnp.maximum(h + b1_ref[...], 0.0)                   # (B, C*HW), channel-major

    # ConvTranspose2d(k=2, s=2): kernel == stride => each input pixel produces a
    # disjoint 2x2 output patch, so for patch position p = r*2 + s:
    #   out[b, p*HW + n] = sigmoid( sum_c h[b, c*HW + n] * w2[c*4 + p] + bt )
    # VPU scalar-broadcast FMAs over lane-aligned slices; per-patch stores go
    # straight to lane-aligned slices of o_ref (no concatenate temporary), and
    # the EUP sigmoid of patch p overlaps the FMAs of patch p+1.
    bt = bt_ref[0]
    for p in range(kk):
        acc = h[:, 0:hw] * w2_ref[p]                         # c = 0
        for c in range(1, channels):
            acc = acc + h[:, c * hw:(c + 1) * hw] * w2_ref[c * kk + p]
        x = acc + bt
        # sigmoid(x) = 1 / (1 + exp(-x)); exp + reciprocal both on the EUP slot.
        o_ref[:, p * hw:(p + 1) * hw] = pl.reciprocal(1.0 + jnp.exp(-x),
                                                      approx=True)


def fused_decoder_forward(z, w1t, b1r, w2f, bt, *, channels, height, width,
                          batch_block=8):
    """z: (B, lod); w1t: (lod, C*H*W); b1r: (1, C*H*W); w2f: (C*4,); bt: (1,)."""
    B, lod = z.shape
    hw = height * width
    kk = 4  # 2x2 patch
    hidden_out = w1t.shape[1]
    kernel = functools.partial(_fused_decoder_kernel,
                               channels=channels, hw=hw, kk=kk)
    out_shape = jax.ShapeDtypeStruct((B, kk * hw), jnp.float32)
    # Advisory cost hint: lets XLA schedule this tiny custom call tightly.
    cost = pl.CostEstimate(
        flops=2 * B * lod * hidden_out + 2 * B * kk * hw * channels,
        transcendentals=B * kk * hw,
        bytes_accessed=4 * (B * lod + lod * hidden_out + hidden_out
                            + channels * kk + 1 + B * kk * hw),
    )
    smem = pltpu.MemorySpace.SMEM
    vmem = pltpu.MemorySpace.VMEM

    if B > batch_block and B % batch_block == 0:
        # Large / time-folded batch: 1-D grid over 8-row batch blocks, marked
        # "parallel" so v7x's two TensorCores can shard it (no effect v5e/v6e).
        return pl.pallas_call(
            kernel,
            out_shape=out_shape,
            grid=(B // batch_block,),
            in_specs=[
                pl.BlockSpec((batch_block, lod), lambda i: (i, 0)),       # z
                pl.BlockSpec((lod, hidden_out), lambda i: (0, 0)),        # W1^T
                pl.BlockSpec((1, hidden_out), lambda i: (0, 0)),          # b1
                pl.BlockSpec(memory_space=smem),                          # deconv w (16,)
                pl.BlockSpec(memory_space=smem),                          # deconv b (1,)
            ],
            out_specs=pl.BlockSpec((batch_block, kk * hw), lambda i: (i, 0)),
            compiler_params=pltpu.CompilerParams(
                dimension_semantics=("parallel",)),
            cost_estimate=cost,
        )(z, w1t, b1r, w2f, bt)

    # Tiny batch (e.g. B=2): single grid-less invocation, no per-step overhead.
    return pl.pallas_call(
        kernel,
        out_shape=out_shape,
        in_specs=[
            pl.BlockSpec(memory_space=vmem),     # z
            pl.BlockSpec(memory_space=vmem),     # W1^T
            pl.BlockSpec(memory_space=vmem),     # b1
            pl.BlockSpec(memory_space=smem),     # deconv weight (16,)
            pl.BlockSpec(memory_space=smem),     # deconv bias (1,)
        ],
        out_specs=pl.BlockSpec(memory_space=vmem),
        cost_estimate=cost,
    )(z, w1t, b1r, w2f, bt)


# ----------------------------------------------------------------------------
# Full forward (Pallas kernel + patch-scatter / crop glue) under ONE jit.
# ----------------------------------------------------------------------------
def _decode_impl(latent_mean, w1t, b1r, w2f, bt, *,
                 channels, height, width, pad, ks):
    z = latent_mean.astype(jnp.float32)
    B = z.shape[0]
    H, W = height, width
    y = fused_decoder_forward(z, w1t, b1r, w2f, bt,
                              channels=channels, height=H, width=W)  # (B, 4*H*W)
    # y layout: y[b, (r*2+s)*H*W + i*W + j] -> full image at (2i+r, 2j+s).
    img = y.reshape(B, ks, ks, H, W)                 # (b, r, s, i, j)
    img = jnp.transpose(img, (0, 3, 1, 4, 2))        # (b, i, r, j, s)
    img = img.reshape(B, ks * H, ks * W)             # (B, 2H, 2W)
    img = img[:, pad:ks * H - pad, pad:ks * W - pad]  # crop padding=5
    return img[:, None, :, :]                         # NCHW: (B, 1, 2H-10, 2W-10)


_decode = jax.jit(_decode_impl,
                  static_argnames=("channels", "height", "width", "pad", "ks"))


def _decode_seq_impl(latent_seq, w1t, b1r, w2f, bt, *,
                     channels, height, width, pad, ks):
    # Fold time into batch so one pallas_call amortizes launch cost and fills
    # sublanes; un-fold afterwards. All inside one jit dispatch.
    T, B, lod = latent_seq.shape
    flat = latent_seq.reshape(T * B, lod)
    out = _decode_impl(flat, w1t, b1r, w2f, bt, channels=channels,
                       height=height, width=width, pad=pad, ks=ks)
    return out.reshape(T, B, *out.shape[1:])


_decode_seq = jax.jit(_decode_seq_impl,
                      static_argnames=("channels", "height", "width", "pad", "ks"))


# ----------------------------------------------------------------------------
# BernoulliDecoder forward (Pallas-backed)
# ----------------------------------------------------------------------------
class BernoulliDecoderPallas:
    """Pallas port of BernoulliDecoder.

    Hidden layers (concrete instantiation of the abstract _build_hidden_layers):
        Linear(lod -> C*H*W), ReLU, view to (B, C, H, W)
    Out layer:
        ConvTranspose2d(C, 1, kernel_size=2, stride=2, padding=5), Sigmoid
    """

    PAD = 5       # fixed by the reference module
    KS = 2        # kernel_size == stride == 2

    def __init__(self, lod: int, channels: int, height: int, width: int, key):
        self.lod = lod
        self.C, self.H, self.W = channels, height, width
        hidden_out = channels * height * width

        k1, k2, k3, k4 = jax.random.split(key, 4)
        # nn.Linear(lod, hidden_out): weight (hidden_out, lod), bias (hidden_out,)
        w1 = 0.1 * jax.random.normal(k1, (hidden_out, lod), jnp.float32)
        b1 = 0.1 * jax.random.normal(k2, (hidden_out,), jnp.float32)
        # nn.ConvTranspose2d(C, 1, 2, 2, padding=5):
        #   weight (in_ch=C, out_ch=1, kH=2, kW=2), bias (1,)
        wt = 0.1 * jax.random.normal(k3, (channels, 1, 2, 2), jnp.float32)
        bt = 0.1 * jax.random.normal(k4, (1,), jnp.float32)

        # Hoisted, kernel-ready parameter layouts (one-time work at init):
        self.w1t = jnp.asarray(w1.T)                         # (lod, C*H*W)
        self.b1r = b1.reshape(1, hidden_out)                 # (1, C*H*W)
        self.w2f = wt.reshape(-1)                            # (C*4,) = [c, r, s]
        self.bt = bt                                         # (1,)

    def __call__(self, latent_mean):
        """latent_mean: (B, lod) -> (B, 1, 2H-10, 2W-10)."""
        return _decode(latent_mean, self.w1t, self.b1r, self.w2f, self.bt,
                       channels=self.C, height=self.H, width=self.W,
                       pad=self.PAD, ks=self.KS)

    def decode_sequence(self, latent_mean_seq):
        """latent_mean_seq: (T, B, lod) -> (T, B, 1, 2H-10, 2W-10).

        Folds time into the batch so a single fused pallas_call handles all
        T*B rows (amortizes launch cost, fills sublanes, enables the v7x
        dual-TensorCore gridded path).
        """
        return _decode_seq(latent_mean_seq, self.w1t, self.b1r, self.w2f, self.bt,
                           channels=self.C, height=self.H, width=self.W,
                           pad=self.PAD, ks=self.KS)


if __name__ == "__main__":
    key = jax.random.PRNGKey(0)
    k_params, k_data, k_seq = jax.random.split(key, 3)

    B, lod = 2, 8
    C, H, W = 4, 16, 16   # concrete hidden-layer output image size (H*W = 256)

    decoder = BernoulliDecoderPallas(lod, C, H, W, k_params)
    latent_mean = jax.random.normal(k_data, (B, lod), jnp.float32)

    out = jax.block_until_ready(decoder(latent_mean))

    expected_hw = 2 * H - 2 * BernoulliDecoderPallas.PAD   # (H-1)*2 - 2*5 + 2 = 22
    assert out.shape == (B, 1, expected_hw, expected_hw), out.shape
    assert out.dtype == jnp.float32
    assert bool(jnp.all(jnp.isfinite(out)))
    # approx-EUP reciprocal sigmoid can exceed 1.0 by ~2^-12 relative error
    assert bool(jnp.all((out >= 0.0) & (out <= 1.0 + 2e-3)))

    # Amortized / time-folded path: exercises the gridded (megacore) variant.
    T = 8
    latent_seq = jax.random.normal(k_seq, (T, B, lod), jnp.float32)
    out_seq = jax.block_until_ready(decoder.decode_sequence(latent_seq))
    assert out_seq.shape == (T, B, 1, expected_hw, expected_hw), out_seq.shape
    assert bool(jnp.all(jnp.isfinite(out_seq)))

    # Consistency between the grid-less (B=2) and gridded (T*B=16) paths.
    out0 = jax.block_until_ready(decoder(latent_seq[0]))
    assert bool(jnp.allclose(out_seq[0], out0, atol=1e-5, rtol=1e-5))

    print("KERNEL_OK")
</pallas_src>

<mosaic_0001>
module attributes {stable_mosaic.version = 11 : i64} {
  func.func @_fused_decoder_kernel(%arg0: memref<2x8xf32, #tpu.memory_space<vmem>>, %arg1: memref<8x1024xf32, #tpu.memory_space<vmem>>, %arg2: memref<1x1024xf32, #tpu.memory_space<vmem>>, %arg3: memref<16xf32, #tpu.memory_space<smem>>, %arg4: memref<1xf32, #tpu.memory_space<smem>>, %arg5: memref<2x1024xf32, #tpu.memory_space<vmem>>) attributes {dimension_semantics = [], scalar_prefetch = 0 : i64, scratch_operands = 0 : i64, tpu.core_type = #tpu.core_type<tc>} {
    %c0 = arith.constant 0 : index
    %c0_0 = arith.constant 0 : index
    %0 = vector.load %arg0[%c0, %c0_0] : memref<2x8xf32, #tpu.memory_space<vmem>>, vector<2x8xf32>
    %c0_1 = arith.constant 0 : index
    %c0_2 = arith.constant 0 : index
    %1 = vector.load %arg1[%c0_1, %c0_2] : memref<8x1024xf32, #tpu.memory_space<vmem>>, vector<8x1024xf32>
    %cst = arith.constant dense<0.000000e+00> : vector<2x1024xf32>
    %2 = tpu.matmul %0, %1, %cst {dimension_numbers = #tpu.dot_dimension_numbers<[1], [0], [0], [1], [0, 0, 1, 1], [], []>} : vector<2x8xf32>, vector<8x1024xf32>, vector<2x1024xf32> -> vector<2x1024xf32>
    %c0_3 = arith.constant 0 : index
    %c0_4 = arith.constant 0 : index
    %3 = vector.load %arg2[%c0_3, %c0_4] : memref<1x1024xf32, #tpu.memory_space<vmem>>, vector<1x1024xf32>
    %4 = vector.broadcast %3 : vector<1x1024xf32> to vector<2x1024xf32>
    %5 = arith.addf %2, %4 : vector<2x1024xf32>
    %cst_5 = arith.constant 0.000000e+00 : f32
    %6 = vector.broadcast %cst_5 : f32 to vector<2x1024xf32>
    %7 = arith.maximumf %5, %6 : vector<2x1024xf32>
    %c0_6 = arith.constant 0 : index
    %8 = memref.load %arg4[%c0_6] : memref<1xf32, #tpu.memory_space<smem>>
    %9 = vector.extract_strided_slice %7 {offsets = [0, 0], sizes = [2, 256], strides = [1, 1]} : vector<2x1024xf32> to vector<2x256xf32>
    %c0_7 = arith.constant 0 : index
    %10 = memref.load %arg3[%c0_7] : memref<16xf32, #tpu.memory_space<smem>>
    %11 = vector.broadcast %10 : f32 to vector<2x256xf32>
    %12 = arith.mulf %9, %11 : vector<2x256xf32>
    %13 = vector.extract_strided_slice %7 {offsets = [0, 256], sizes = [2, 256], strides = [1, 1]} : vector<2x1024xf32> to vector<2x256xf32>
    %c4 = arith.constant 4 : index
    %14 = memref.load %arg3[%c4] : memref<16xf32, #tpu.memory_space<smem>>
    %15 = vector.broadcast %14 : f32 to vector<2x256xf32>
    %16 = arith.mulf %13, %15 : vector<2x256xf32>
    %17 = arith.addf %12, %16 : vector<2x256xf32>
    %18 = vector.extract_strided_slice %7 {offsets = [0, 512], sizes = [2, 256], strides = [1, 1]} : vector<2x1024xf32> to vector<2x256xf32>
    %c8 = arith.constant 8 : index
    %19 = memref.load %arg3[%c8] : memref<16xf32, #tpu.memory_space<smem>>
    %20 = vector.broadcast %19 : f32 to vector<2x256xf32>
    %21 = arith.mulf %18, %20 : vector<2x256xf32>
    %22 = arith.addf %17, %21 : vector<2x256xf32>
    %23 = vector.extract_strided_slice %7 {offsets = [0, 768], sizes = [2, 256], strides = [1, 1]} : vector<2x1024xf32> to vector<2x256xf32>
    %c12 = arith.constant 12 : index
    %24 = memref.load %arg3[%c12] : memref<16xf32, #tpu.memory_space<smem>>
    %25 = vector.broadcast %24 : f32 to vector<2x256xf32>
    %26 = arith.mulf %23, %25 : vector<2x256xf32>
    %27 = arith.addf %22, %26 : vector<2x256xf32>
    %28 = vector.broadcast %8 : f32 to vector<2x256xf32>
    %29 = arith.addf %27, %28 : vector<2x256xf32>
    %cst_8 = arith.constant 0.000000e+00 : f32
    %30 = vector.broadcast %cst_8 : f32 to vector<2x256xf32>
    %31 = arith.subf %30, %29 : vector<2x256xf32>
    %32 = math.exp %31 : vector<2x256xf32>
    %cst_9 = arith.constant 1.000000e+00 : f32
    %33 = vector.broadcast %cst_9 : f32 to vector<2x256xf32>
    %34 = arith.addf %33, %32 : vector<2x256xf32>
    %35 = tpu.reciprocal %34 {approx = true} : vector<2x256xf32> -> vector<2x256xf32>
    %c0_10 = arith.constant 0 : index
    %c0_11 = arith.constant 0 : index
    %36 = vector.load %arg5[%c0_10, %c0_11] : memref<2x1024xf32, #tpu.memory_space<vmem>>, vector<2x256xf32>
    tpu.vector_store %arg5[%c0_10, %c0_11], %35 {strides = array<i32>} : memref<2x1024xf32, #tpu.memory_space<vmem>>, vector<2x256xf32>,
    %37 = vector.extract_strided_slice %7 {offsets = [0, 0], sizes = [2, 256], strides = [1, 1]} : vector<2x1024xf32> to vector<2x256xf32>
    %c1 = arith.constant 1 : index
    %38 = memref.load %arg3[%c1] : memref<16xf32, #tpu.memory_space<smem>>
    %39 = vector.broadcast %38 : f32 to vector<2x256xf32>
    %40 = arith.mulf %37, %39 : vector<2x256xf32>
    %41 = vector.extract_strided_slice %7 {offsets = [0, 256], sizes = [2, 256], strides = [1, 1]} : vector<2x1024xf32> to vector<2x256xf32>
    %c5 = arith.constant 5 : index
    %42 = memref.load %arg3[%c5] : memref<16xf32, #tpu.memory_space<smem>>
    %43 = vector.broadcast %42 : f32 to vector<2x256xf32>
    %44 = arith.mulf %41, %43 : vector<2x256xf32>
    %45 = arith.addf %40, %44 : vector<2x256xf32>
    %46 = vector.extract_strided_slice %7 {offsets = [0, 512], sizes = [2, 256], strides = [1, 1]} : vector<2x1024xf32> to vector<2x256xf32>
    %c9 = arith.constant 9 : index
    %47 = memref.load %arg3[%c9] : memref<16xf32, #tpu.memory_space<smem>>
    %48 = vector.broadcast %47 : f32 to vector<2x256xf32>
    %49 = arith.mulf %46, %48 : vector<2x256xf32>
    %50 = arith.addf %45, %49 : vector<2x256xf32>
    %51 = vector.extract_strided_slice %7 {offsets = [0, 768], sizes = [2, 256], strides = [1, 1]} : vector<2x1024xf32> to vector<2x256xf32>
    %c13 = arith.constant 13 : index
    %52 = memref.load %arg3[%c13] : memref<16xf32, #tpu.memory_space<smem>>
    %53 = vector.broadcast %52 : f32 to vector<2x256xf32>
    %54 = arith.mulf %51, %53 : vector<2x256xf32>
    %55 = arith.addf %50, %54 : vector<2x256xf32>
    %56 = vector.broadcast %8 : f32 to vector<2x256xf32>
    %57 = arith.addf %55, %56 : vector<2x256xf32>
    %cst_12 = arith.constant 0.000000e+00 : f32
    %58 = vector.broadcast %cst_12 : f32 to vector<2x256xf32>
    %59 = arith.subf %58, %57 : vector<2x256xf32>
    %60 = math.exp %59 : vector<2x256xf32>
    %cst_13 = arith.constant 1.000000e+00 : f32
    %61 = vector.broadcast %cst_13 : f32 to vector<2x256xf32>
    %62 = arith.addf %61, %60 : vector<2x256xf32>
    %63 = tpu.reciprocal %62 {approx = true} : vector<2x256xf32> -> vector<2x256xf32>
    %c0_14 = arith.constant 0 : index
    %c256 = arith.constant 256 : index
    %64 = vector.load %arg5[%c0_14, %c256] : memref<2x1024xf32, #tpu.memory_space<vmem>>, vector<2x256xf32>
    tpu.vector_store %arg5[%c0_14, %c256], %63 {strides = array<i32>} : memref<2x1024xf32, #tpu.memory_space<vmem>>, vector<2x256xf32>,
    %65 = vector.extract_strided_slice %7 {offsets = [0, 0], sizes = [2, 256], strides = [1, 1]} : vector<2x1024xf32> to vector<2x256xf32>
    %c2 = arith.constant 2 : index
    %66 = memref.load %arg3[%c2] : memref<16xf32, #tpu.memory_space<smem>>
    %67 = vector.broadcast %66 : f32 to vector<2x256xf32>
    %68 = arith.mulf %65, %67 : vector<2x256xf32>
    %69 = vector.extract_strided_slice %7 {offsets = [0, 256], sizes = [2, 256], strides = [1, 1]} : vector<2x1024xf32> to vector<2x256xf32>
    %c6 = arith.constant 6 : index
    %70 = memref.load %arg3[%c6] : memref<16xf32, #tpu.memory_space<smem>>
    %71 = vector.broadcast %70 : f32 to vector<2x256xf32>
    %72 = arith.mulf %69, %71 : vector<2x256xf32>
    %73 = arith.addf %68, %72 : vector<2x256xf32>
    %74 = vector.extract_strided_slice %7 {offsets = [0, 512], sizes = [2, 256], strides = [1, 1]} : vector<2x1024xf32> to vector<2x256xf32>
    %c10 = arith.constant 10 : index
    %75 = memref.load %arg3[%c10] : memref<16xf32, #tpu.memory_space<smem>>
    %76 = vector.broadcast %75 : f32 to vector<2x256xf32>
    %77 = arith.mulf %74, %76 : vector<2x256xf32>
    %78 = arith.addf %73, %77 : vector<2x256xf32>
    %79 = vector.extract_strided_slice %7 {offsets = [0, 768], sizes = [2, 256], strides = [1, 1]} : vector<2x1024xf32> to vector<2x256xf32>
    %c14 = arith.constant 14 : index
    %80 = memref.load %arg3[%c14] : memref<16xf32, #tpu.memory_space<smem>>
    %81 = vector.broadcast %80 : f32 to vector<2x256xf32>
    %82 = arith.mulf %79, %81 : vector<2x256xf32>
    %83 = arith.addf %78, %82 : vector<2x256xf32>
    %84 = vector.broadcast %8 : f32 to vector<2x256xf32>
    %85 = arith.addf %83, %84 : vector<2x256xf32>
    %cst_15 = arith.constant 0.000000e+00 : f32
    %86 = vector.broadcast %cst_15 : f32 to vector<2x256xf32>
    %87 = arith.subf %86, %85 : vector<2x256xf32>
    %88 = math.exp %87 : vector<2x256xf32>
    %cst_16 = arith.constant 1.000000e+00 : f32
    %89 = vector.broadcast %cst_16 : f32 to vector<2x256xf32>
    %90 = arith.addf %89, %88 : vector<2x256xf32>
    %91 = tpu.reciprocal %90 {approx = true} : vector<2x256xf32> -> vector<2x256xf32>
    %c0_17 = arith.constant 0 : index
    %c512 = arith.constant 512 : index
    %92 = vector.load %arg5[%c0_17, %c512] : memref<2x1024xf32, #tpu.memory_space<vmem>>, vector<2x256xf32>
    tpu.vector_store %arg5[%c0_17, %c512], %91 {strides = array<i32>} : memref<2x1024xf32, #tpu.memory_space<vmem>>, vector<2x256xf32>,
    %93 = vector.extract_strided_slice %7 {offsets = [0, 0], sizes = [2, 256], strides = [1, 1]} : vector<2x1024xf32> to vector<2x256xf32>
    %c3 = arith.constant 3 : index
    %94 = memref.load %arg3[%c3] : memref<16xf32, #tpu.memory_space<smem>>
    %95 = vector.broadcast %94 : f32 to vector<2x256xf32>
    %96 = arith.mulf %93, %95 : vector<2x256xf32>
    %97 = vector.extract_strided_slice %7 {offsets = [0, 256], sizes = [2, 256], strides = [1, 1]} : vector<2x1024xf32> to vector<2x256xf32>
    %c7 = arith.constant 7 : index
    %98 = memref.load %arg3[%c7] : memref<16xf32, #tpu.memory_space<smem>>
    %99 = vector.broadcast %98 : f32 to vector<2x256xf32>
    %100 = arith.mulf %97, %99 : vector<2x256xf32>
    %101 = arith.addf %96, %100 : vector<2x256xf32>
    %102 = vector.extract_strided_slice %7 {offsets = [0, 512], sizes = [2, 256], strides = [1, 1]} : vector<2x1024xf32> to vector<2x256xf32>
    %c11 = arith.constant 11 : index
    %103 = memref.load %arg3[%c11] : memref<16xf32, #tpu.memory_space<smem>>
    %104 = vector.broadcast %103 : f32 to vector<2x256xf32>
    %105 = arith.mulf %102, %104 : vector<2x256xf32>
    %106 = arith.addf %101, %105 : vector<2x256xf32>
    %107 = vector.extract_strided_slice %7 {offsets = [0, 768], sizes = [2, 256], strides = [1, 1]} : vector<2x1024xf32> to vector<2x256xf32>
    %c15 = arith.constant 15 : index
    %108 = memref.load %arg3[%c15] : memref<16xf32, #tpu.memory_space<smem>>
    %109 = vector.broadcast %108 : f32 to vector<2x256xf32>
    %110 = arith.mulf %107, %109 : vector<2x256xf32>
    %111 = arith.addf %106, %110 : vector<2x256xf32>
    %112 = vector.broadcast %8 : f32 to vector<2x256xf32>
    %113 = arith.addf %111, %112 : vector<2x256xf32>
    %cst_18 = arith.constant 0.000000e+00 : f32
    %114 = vector.broadcast %cst_18 : f32 to vector<2x256xf32>
    %115 = arith.subf %114, %113 : vector<2x256xf32>
    %116 = math.exp %115 : vector<2x256xf32>
    %cst_19 = arith.constant 1.000000e+00 : f32
    %117 = vector.broadcast %cst_19 : f32 to vector<2x256xf32>
    %118 = arith.addf %117, %116 : vector<2x256xf32>
    %119 = tpu.reciprocal %118 {approx = true} : vector<2x256xf32> -> vector<2x256xf32>
    %c0_20 = arith.constant 0 : index
    %c768 = arith.constant 768 : index
    %120 = vector.load %arg5[%c0_20, %c768] : memref<2x1024xf32, #tpu.memory_space<vmem>>, vector<2x256xf32>
    tpu.vector_store %arg5[%c0_20, %c768], %119 {strides = array<i32>} : memref<2x1024xf32, #tpu.memory_space<vmem>>, vector<2x256xf32>,
    return
  }
}

</mosaic_0001>

<llo_original>
// kernel: _decode_impl.1
$region0: #{_decode_impl.1}
  #allocation0 [shape = 'u32[]', space=smem, size = 0x4, offset = 0x4, fixed_abs, tag = 'smem constant byte address 0x4 - core index']
  #allocation1 [shape = 'u32[72,128]{1,0:T(1,128)}', space=vmem, size = 0x9000, scoped, tag = 'internal scratch']
  #allocation2 [shape = 'f32[1]{0:T(128)S(6)}', space=smem, size = 0x200, scoped, tag = 'scoped memory for _decode_impl.1']
  %s0 = inlined_call_operand.vmem [shape: f32[2,8], index: 0, kind: input, shape index: {}]
  %s1 = inlined_call_operand.hbm [shape: f32[8,1024], index: 1, kind: input, shape index: {}]
  %s2 = inlined_call_operand.hbm [shape: f32[1,1024], index: 2, kind: input, shape index: {}]
  %s3 = inlined_call_operand.vmem [shape: f32[16], index: 3, kind: input, shape index: {}]
  %s4 = inlined_call_operand.<no memory space> [shape: f32[1], index: 4, kind: input, shape index: {}]
  %s5 = inlined_call_operand.vmem [shape: f32[2,1024], index: 5, kind: output, shape index: {}]
  %s6 = sld [smem:[#allocation0]]
  $region42: #{_decode_impl.1} parent=0
    _
  %s8 = ssub.s32 1, %s6
  %s9 = scalar_select 0, %s8, %s6
  %10 = sst [smem:[#allocation2]] %s4
  $region1: #{_decode_impl.1} parent=0
    #allocation3 [shape = 'u8[32768]{0}', space=vmem, size = 0x8000, scoped, tag = 'input window, operand 1, single buffered']
    #allocation4 [shape = 's32[1]{0}', space=sflag, size = 0x4, scoped, tag = 'scoped memory for _decode_impl.1']
    #allocation5 [shape = 's32[1]{0}', space=sflag, size = 0x4, scoped, tag = 'scoped memory for _decode_impl.1']
    #allocation6 [shape = 'u8[4096]{0}', space=vmem, size = 0x1000, scoped, tag = 'input window, operand 2, single buffered']
    #allocation7 [shape = 's32[1]{0}', space=sflag, size = 0x4, scoped, tag = 'scoped memory for _decode_impl.1']
    #allocation8 [shape = 'u8[512]{0}', space=smem, size = 0x200, scoped, tag = 'input window, operand 3, single buffered']
    %11 = vsyncpa [#allocation4], 0
    %12 = vsyncpa [#allocation7], 0
    %13 = vsyncpa [#allocation5], 0
    // Predicated region
    $region2: #{_decode_impl.1} parent=1 // pred_check
      _
    $region3: #{_decode_impl.1} parent=1 // pred_check_branch
      %15 = sbr.rel (0) target = $region5
    $region4: #{_decode_impl.1} parent=1 // pred_region
      _
    $region5: #{_decode_impl.1} parent=1 // pred_fallthru
      _
    // Predicated region
    $region6: #{_decode_impl.1} parent=1 // pred_check
      _
    $region7: #{_decode_impl.1} parent=1 // pred_check_branch
      %17 = sbr.rel (0) target = $region9
    $region8: #{_decode_impl.1} parent=1 // pred_region
      %19 = vsyncadd [#allocation4], 0
      %s21 = sshll.u32 %s1, 4
      %s22 = int_to_ptr.hbm [resolvable:$true] %s21
      %s23 = sshll.u32 [#allocation3], 4
      %s24 = int_to_ptr.vmem [resolvable:$true] %s23
      %26 = dma.hbm_to_vmem [thread:$0]  %s22, 1024, %s24, [#allocation4]
    $region9: #{_decode_impl.1} parent=1 // pred_fallthru
      _
    // Predicated region
    $region10: #{_decode_impl.1} parent=1 // pred_check
      _
    $region11: #{_decode_impl.1} parent=1 // pred_check_branch
      %28 = sbr.rel (0) target = $region13
    $region12: #{_decode_impl.1} parent=1 // pred_region
      %30 = vsyncadd [#allocation7], 0
      %s32 = sshll.u32 %s2, 4
      %s33 = int_to_ptr.hbm [resolvable:$true] %s32
      %s34 = sshll.u32 [#allocation6], 4
      %s35 = int_to_ptr.vmem [resolvable:$true] %s34
      %37 = dma.hbm_to_vmem [thread:$0]  %s33, 128, %s35, [#allocation7]
    $region13: #{_decode_impl.1} parent=1 // pred_fallthru
      _
    // Predicated region
    $region14: #{_decode_impl.1} parent=1 // pred_check
      _
    $region15: #{_decode_impl.1} parent=1 // pred_check_branch
      %39 = sbr.rel (0) target = $region17
    $region16: #{_decode_impl.1} parent=1 // pred_region
      %41 = vsyncadd [#allocation5], 0
      %s43 = sshll.u32 %s3, 4
      %s44 = int_to_ptr.vmem [resolvable:$true] %s43
      %46 = dma.vmem_to_smem %s44, 16, [#allocation8], [#allocation5]
    $region17: #{_decode_impl.1} parent=1 // pred_fallthru
      _
    // Predicated region
    $region18: #{_decode_impl.1} parent=1 // pred_check
      _
    $region19: #{_decode_impl.1} parent=1 // pred_check_branch
      %48 = sbr.rel (0) target = $region21
    $region20: #{_decode_impl.1} parent=1 // pred_region
      _
    $region21: #{_decode_impl.1} parent=1 // pred_fallthru
      _
    // Predicated region
    $region22: #{_decode_impl.1} parent=1 // pred_check
      _
    $region23: #{_decode_impl.1} parent=1 // pred_check_branch
      %50 = sbr.rel (0) target = $region25
    $region24: #{_decode_impl.1} parent=1 // pred_region
      %52 = dma.done [#allocation4], 1024
    $region25: #{_decode_impl.1} parent=1 // pred_fallthru
      _
    // Predicated region
    $region26: #{_decode_impl.1} parent=1 // pred_check
      _
    $region27: #{_decode_impl.1} parent=1 // pred_check_branch
      %54 = sbr.rel (0) target = $region29
    $region28: #{_decode_impl.1} parent=1 // pred_region
      %56 = dma.done [#allocation7], 128
    $region29: #{_decode_impl.1} parent=1 // pred_fallthru
      _
    // Predicated region
    $region30: #{_decode_impl.1} parent=1 // pred_check
      _
    $region31: #{_decode_impl.1} parent=1 // pred_check_branch
      %58 = sbr.rel (0) target = $region33
    $region32: #{_decode_impl.1} parent=1 // pred_region
      %60 = dma.done [#allocation5], 16
    $region33: #{_decode_impl.1} parent=1 // pred_fallthru
      _
    %61 = sfence
    %v62 = vld [vmem:[%s0] sm:$0x3]
    %v63 = vld [vmem:[#allocation3] sm:$0xff]
    %v64 = vld [vmem:[#allocation3 + $0x8] sm:$0xff]
    %v65 = vld [vmem:[#allocation3 + $0x10] sm:$0xff]
    %v66 = vld [vmem:[#allocation3 + $0x18] sm:$0xff]
    %v67 = vld [vmem:[#allocation3 + $0x20] sm:$0xff]
    %v68 = vld [vmem:[#allocation3 + $0x28] sm:$0xff]
    %v69 = vld [vmem:[#allocation3 + $0x30] sm:$0xff]
    %v70 = vld [vmem:[#allocation3 + $0x38] sm:$0xff]
    %v71 = vld [vmem:[#allocation6] sm:$0xff]
    %v73 = vperm.slane %v71, 0
    %v74 = vperm.slane %v71, 1
    %v75 = vperm.slane %v71, 2
    %v76 = vperm.slane %v71, 3
    %v77 = vperm.slane %v71, 4
    %v78 = vperm.slane %v71, 5
    %v79 = vperm.slane %v71, 6
    %v80 = vperm.slane %v71, 7
    %vm89 = vcmask 64512
    %v91 = vsel %vm89, %v62, 0
    %93 = vmatpush.msra.mxu0 0.0
    %94 = vmatpush.msra.mxu0 0.0
    %95 = vmatpush.msra.mxu0 0.0
    %96 = vmatpush.msra.mxu0 0.0
    %97 = vmatpush.msra.mxu0 0.0
    %98 = vmatpush.msra.mxu0 0.0
    %99 = vmatpush.msra.mxu0 0.0
    %100 = vmatpush.msra.mxu0 0.0
    %101 = vmatpush.msra.mxu0 0.0
    %102 = vmatpush.msra.mxu0 0.0
    %103 = vmatpush.msra.mxu0 0.0
    %104 = vmatpush.msra.mxu0 0.0
    %105 = vmatpush.msra.mxu0 0.0
    %106 = vmatpush.msra.mxu0 0.0
    %107 = vmatpush.msra.mxu0 0.0
    %108 = vmatpush.msra.mxu0 %v63
    %109 = vmatmul.f32.gmra.mxu0 %v91
    %v110 = vpop.f32.mrf.mxu0
    %v111 = vadd.f32 %v73, %v110
    %112 = vdwg.mxu0
    %113 = vmatpush.msra.mxu0 0.0
    %114 = vmatpush.msra.mxu0 0.0
    %115 = vmatpush.msra.mxu0 0.0
    %116 = vmatpush.msra.mxu0 0.0
    %117 = vmatpush.msra.mxu0 0.0
    %118 = vmatpush.msra.mxu0 0.0
    %119 = vmatpush.msra.mxu0 0.0
    %120 = vmatpush.msra.mxu0 0.0
    %121 = vmatpush.msra.mxu0 0.0
    %122 = vmatpush.msra.mxu0 0.0
    %123 = vmatpush.msra.mxu0 0.0
    %124 = vmatpush.msra.mxu0 0.0
    %125 = vmatpush.msra.mxu0 0.0
    %126 = vmatpush.msra.mxu0 0.0
    %127 = vmatpush.msra.mxu0 0.0
    %128 = vmatpush.msra.mxu0 %v64
    %129 = vmatmul.f32.gmra.mxu0 %v91
    %v130 = vpop.f32.mrf.mxu0
    %v131 = vadd.f32 %v74, %v130
    %132 = vdwg.mxu0
    %133 = vmatpush.msra.mxu0 0.0
    %134 = vmatpush.msra.mxu0 0.0
    %135 = vmatpush.msra.mxu0 0.0
    %136 = vmatpush.msra.mxu0 0.0
    %137 = vmatpush.msra.mxu0 0.0
    %138 = vmatpush.msra.mxu0 0.0
    %139 = vmatpush.msra.mxu0 0.0
    %140 = vmatpush.msra.mxu0 0.0
    %141 = vmatpush.msra.mxu0 0.0
    %142 = vmatpush.msra.mxu0 0.0
    %143 = vmatpush.msra.mxu0 0.0
    %144 = vmatpush.msra.mxu0 0.0
    %145 = vmatpush.msra.mxu0 0.0
    %146 = vmatpush.msra.mxu0 0.0
    %147 = vmatpush.msra.mxu0 0.0
    %148 = vmatpush.msra.mxu0 %v65
    %149 = vmatmul.f32.gmra.mxu0 %v91
    %v150 = vpop.f32.mrf.mxu0
    %v151 = vadd.f32 %v75, %v150
    %152 = vdwg.mxu0
    %153 = vmatpush.msra.mxu0 0.0
    %154 = vmatpush.msra.mxu0 0.0
    %155 = vmatpush.msra.mxu0 0.0
    %156 = vmatpush.msra.mxu0 0.0
    %157 = vmatpush.msra.mxu0 0.0
    %158 = vmatpush.msra.mxu0 0.0
    %159 = vmatpush.msra.mxu0 0.0
    %160 = vmatpush.msra.mxu0 0.0
    %161 = vmatpush.msra.mxu0 0.0
    %162 = vmatpush.msra.mxu0 0.0
    %163 = vmatpush.msra.mxu0 0.0
    %164 = vmatpush.msra.mxu0 0.0
    %165 = vmatpush.msra.mxu0 0.0
    %166 = vmatpush.msra.mxu0 0.0
    %167 = vmatpush.msra.mxu0 0.0
    %168 = vmatpush.msra.mxu0 %v66
    %169 = vmatmul.f32.gmra.mxu0 %v91
    %v170 = vpop.f32.mrf.mxu0
    %v171 = vadd.f32 %v76, %v170
    %172 = vdwg.mxu0
    %173 = vmatpush.msra.mxu0 0.0
    %174 = vmatpush.msra.mxu0 0.0
    %175 = vmatpush.msra.mxu0 0.0
    %176 = vmatpush.msra.mxu0 0.0
    %177 = vmatpush.msra.mxu0 0.0
    %178 = vmatpush.msra.mxu0 0.0
    %179 = vmatpush.msra.mxu0 0.0
    %180 = vmatpush.msra.mxu0 0.0
    %181 = vmatpush.msra.mxu0 0.0
    %182 = vmatpush.msra.mxu0 0.0
    %183 = vmatpush.msra.mxu0 0.0
    %184 = vmatpush.msra.mxu0 0.0
    %185 = vmatpush.msra.mxu0 0.0
    %186 = vmatpush.msra.mxu0 0.0
    %187 = vmatpush.msra.mxu0 0.0
    %188 = vmatpush.msra.mxu0 %v67
    %189 = vmatmul.f32.gmra.mxu0 %v91
    %v190 = vpop.f32.mrf.mxu0
    %v191 = vadd.f32 %v77, %v190
    %192 = vdwg.mxu0
    %193 = vmatpush.msra.mxu0 0.0
    %194 = vmatpush.msra.mxu0 0.0
    %195 = vmatpush.msra.mxu0 0.0
    %196 = vmatpush.msra.mxu0 0.0
    %197 = vmatpush.msra.mxu0 0.0
    %198 = vmatpush.msra.mxu0 0.0
    %199 = vmatpush.msra.mxu0 0.0
    %200 = vmatpush.msra.mxu0 0.0
    %201 = vmatpush.msra.mxu0 0.0
    %202 = vmatpush.msra.mxu0 0.0
    %203 = vmatpush.msra.mxu0 0.0
    %204 = vmatpush.msra.mxu0 0.0
    %205 = vmatpush.msra.mxu0 0.0
    %206 = vmatpush.msra.mxu0 0.0
    %207 = vmatpush.msra.mxu0 0.0
    %208 = vmatpush.msra.mxu0 %v68
    %209 = vmatmul.f32.gmra.mxu0 %v91
    %v210 = vpop.f32.mrf.mxu0
    %v211 = vadd.f32 %v78, %v210
    %212 = vdwg.mxu0
    %213 = vmatpush.msra.mxu0 0.0
    %214 = vmatpush.msra.mxu0 0.0
    %215 = vmatpush.msra.mxu0 0.0
    %216 = vmatpush.msra.mxu0 0.0
    %217 = vmatpush.msra.mxu0 0.0
    %218 = vmatpush.msra.mxu0 0.0
    %219 = vmatpush.msra.mxu0 0.0
    %220 = vmatpush.msra.mxu0 0.0
    %221 = vmatpush.msra.mxu0 0.0
    %222 = vmatpush.msra.mxu0 0.0
    %223 = vmatpush.msra.mxu0 0.0
    %224 = vmatpush.msra.mxu0 0.0
    %225 = vmatpush.msra.mxu0 0.0
    %226 = vmatpush.msra.mxu0 0.0
    %227 = vmatpush.msra.mxu0 0.0
    %228 = vmatpush.msra.mxu0 %v69
    %229 = vmatmul.f32.gmra.mxu0 %v91
    %v230 = vpop.f32.mrf.mxu0
    %v231 = vadd.f32 %v79, %v230
    %232 = vdwg.mxu0
    %233 = vmatpush.msra.mxu0 0.0
    %234 = vmatpush.msra.mxu0 0.0
    %235 = vmatpush.msra.mxu0 0.0
    %236 = vmatpush.msra.mxu0 0.0
    %237 = vmatpush.msra.mxu0 0.0
    %238 = vmatpush.msra.mxu0 0.0
    %239 = vmatpush.msra.mxu0 0.0
    %240 = vmatpush.msra.mxu0 0.0
    %241 = vmatpush.msra.mxu0 0.0
    %242 = vmatpush.msra.mxu0 0.0
    %243 = vmatpush.msra.mxu0 0.0
    %244 = vmatpush.msra.mxu0 0.0
    %245 = vmatpush.msra.mxu0 0.0
    %246 = vmatpush.msra.mxu0 0.0
    %247 = vmatpush.msra.mxu0 0.0
    %248 = vmatpush.msra.mxu0 %v70
    %249 = vmatmul.f32.gmra.mxu0 %v91
    %v250 = vpop.f32.mrf.mxu0
    %v251 = vadd.f32 %v80, %v250
    %252 = vdwg.mxu0
    %v253 = vmax.f32 %v111, 0.0
    %v254 = vmax.f32 %v131, 0.0
    %v255 = vmax.f32 %v151, 0.0
    %v256 = vmax.f32 %v171, 0.0
    %v257 = vmax.f32 %v191, 0.0
    %v258 = vmax.f32 %v211, 0.0
    %v259 = vmax.f32 %v231, 0.0
    %v260 = vmax.f32 %v251, 0.0
    %s261 = sld [smem:[#allocation2]]
    %s262 = sld [smem:[#allocation8]]
    %v263 = vstv %s262
    %v264 = vmul.f32 %v253, %v263
    %v265 = vmul.f32 %v254, %v263
    %s266 = sld [smem:[#allocation8 + $0x4]]
    %v267 = vstv %s266
    %v268 = vmul.f32 %v255, %v267
    %v269 = vmul.f32 %v256, %v267
    %v270 = vadd.f32 %v264, %v268
    %v271 = vadd.f32 %v265, %v269
    %s272 = sld [smem:[#allocation8 + $0x8]]
    %v273 = vstv %s272
    %v274 = vmul.f32 %v257, %v273
    %v275 = vmul.f32 %v258, %v273
    %v276 = vadd.f32 %v270, %v274
    %v277 = vadd.f32 %v271, %v275
    %s278 = sld [smem:[#allocation8 + $0xc]]
    %v279 = vstv %s278
    %v280 = vmul.f32 %v259, %v279
    %v281 = vmul.f32 %v260, %v279
    %v282 = vadd.f32 %v276, %v280
    %v283 = vadd.f32 %v277, %v281
    %v284 = vstv %s261
    %v285 = vadd.f32 %v282, %v284
    %v286 = vadd.f32 %v283, %v284
    %v287 = vsub.f32 0.0, %v285
    %v288 = vsub.f32 0.0, %v286
    %v289 = vmul.f32 %v287, 1.442695
    %v290 = vpow.pop %v289
    %v291 = vmul.f32 %v288, 1.442695
    %v292 = vpow.pop %v291
    %v293 = vadd.f32 %v290, 1.0
    %v294 = vadd.f32 %v292, 1.0
    %v295 = vrcp.pop %v293
    %v296 = vrcp.pop %v294
    %v299 = vrot.slane %v296, 6
    %vm300 = vcmask 1041408
    %v301 = vsel %vm300, %v295, %v299
    %303 = vst [vmem:[%s5] sm:$0xf] %v301
    %s304 = sld [smem:[#allocation8 + $0x1]]
    %v305 = vstv %s304
    %v306 = vmul.f32 %v253, %v305
    %v307 = vmul.f32 %v254, %v305
    %s308 = sld [smem:[#allocation8 + $0x5]]
    %v309 = vstv %s308
    %v310 = vmul.f32 %v255, %v309
    %v311 = vmul.f32 %v256, %v309
    %v312 = vadd.f32 %v306, %v310
    %v313 = vadd.f32 %v307, %v311
    %s314 = sld [smem:[#allocation8 + $0x9]]
    %v315 = vstv %s314
    %v316 = vmul.f32 %v257, %v315
    %v317 = vmul.f32 %v258, %v315
    %v318 = vadd.f32 %v312, %v316
    %v319 = vadd.f32 %v313, %v317
    %s320 = sld [smem:[#allocation8 + $0xd]]
    %v321 = vstv %s320
    %v322 = vmul.f32 %v259, %v321
    %v323 = vmul.f32 %v260, %v321
    %v324 = vadd.f32 %v318, %v322
    %v325 = vadd.f32 %v319, %v323
    %v326 = vadd.f32 %v324, %v284
    %v327 = vadd.f32 %v325, %v284
    %v328 = vsub.f32 0.0, %v326
    %v329 = vsub.f32 0.0, %v327
    %v330 = vmul.f32 %v328, 1.442695
    %v331 = vpow.pop %v330
    %v332 = vmul.f32 %v329, 1.442695
    %v333 = vpow.pop %v332
    %v334 = vadd.f32 %v331, 1.0
    %v335 = vadd.f32 %v333, 1.0
    %v336 = vrcp.pop %v334
    %v337 = vrcp.pop %v335
    %v340 = vrot.slane %v337, 6
    %v341 = vsel %vm300, %v336, %v340
    %343 = vst [vmem:[%s5 + $0x4] sm:$0xf] %v341
    %s344 = sld [smem:[#allocation8 + $0x2]]
    %v345 = vstv %s344
    %v346 = vmul.f32 %v253, %v345
    %v347 = vmul.f32 %v254, %v345
    %s348 = sld [smem:[#allocation8 + $0x6]]
    %v349 = vstv %s348
    %v350 = vmul.f32 %v255, %v349
    %v351 = vmul.f32 %v256, %v349
    %v352 = vadd.f32 %v346, %v350
    %v353 = vadd.f32 %v347, %v351
    %s354 = sld [smem:[#allocation8 + $0xa]]
    %v355 = vstv %s354
    %v356 = vmul.f32 %v257, %v355
    %v357 = vmul.f32 %v258, %v355
    %v358 = vadd.f32 %v352, %v356
    %v359 = vadd.f32 %v353, %v357
    %s360 = sld [smem:[#allocation8 + $0xe]]
    %v361 = vstv %s360
    %v362 = vmul.f32 %v259, %v361
    %v363 = vmul.f32 %v260, %v361
    %v364 = vadd.f32 %v358, %v362
    %v365 = vadd.f32 %v359, %v363
    %v366 = vadd.f32 %v364, %v284
    %v367 = vadd.f32 %v365, %v284
    %v368 = vsub.f32 0.0, %v366
    %v369 = vsub.f32 0.0, %v367
    %v370 = vmul.f32 %v368, 1.442695
    %v371 = vpow.pop %v370
    %v372 = vmul.f32 %v369, 1.442695
    %v373 = vpow.pop %v372
    %v374 = vadd.f32 %v371, 1.0
    %v375 = vadd.f32 %v373, 1.0
    %v376 = vrcp.pop %v374
    %v377 = vrcp.pop %v375
    %v380 = vrot.slane %v377, 6
    %v381 = vsel %vm300, %v376, %v380
    %383 = vst [vmem:[%s5 + $0x8] sm:$0xf] %v381
    %s384 = sld [smem:[#allocation8 + $0x3]]
    %v385 = vstv %s384
    %v386 = vmul.f32 %v253, %v385
    %v387 = vmul.f32 %v254, %v385
    %s388 = sld [smem:[#allocation8 + $0x7]]
    %v389 = vstv %s388
    %v390 = vmul.f32 %v255, %v389
    %v391 = vmul.f32 %v256, %v389
    %v392 = vadd.f32 %v386, %v390
    %v393 = vadd.f32 %v387, %v391
    %s394 = sld [smem:[#allocation8 + $0xb]]
    %v395 = vstv %s394
    %v396 = vmul.f32 %v257, %v395
    %v397 = vmul.f32 %v258, %v395
    %v398 = vadd.f32 %v392, %v396
    %v399 = vadd.f32 %v393, %v397
    %s400 = sld [smem:[#allocation8 + $0xf]]
    %v401 = vstv %s400
    %v402 = vmul.f32 %v259, %v401
    %v403 = vmul.f32 %v260, %v401
    %v404 = vadd.f32 %v398, %v402
    %v405 = vadd.f32 %v399, %v403
    %v406 = vadd.f32 %v404, %v284
    %v407 = vadd.f32 %v405, %v284
    %v408 = vsub.f32 0.0, %v406
    %v409 = vsub.f32 0.0, %v407
    %v410 = vmul.f32 %v408, 1.442695
    %v411 = vpow.pop %v410
    %v412 = vmul.f32 %v409, 1.442695
    %v413 = vpow.pop %v412
    %v414 = vadd.f32 %v411, 1.0
    %v415 = vadd.f32 %v413, 1.0
    %v416 = vrcp.pop %v414
    %v417 = vrcp.pop %v415
    %v420 = vrot.slane %v417, 6
    %v421 = vsel %vm300, %v416, %v420
    %423 = vst [vmem:[%s5 + $0xc] sm:$0xf] %v421
    // Predicated region
    $region34: #{_decode_impl.1} parent=1 // pred_check
      _
    $region35: #{_decode_impl.1} parent=1 // pred_check_branch
      %425 = sbr.rel (0) target = $region37
    $region36: #{_decode_impl.1} parent=1 // pred_region
      _
    $region37: #{_decode_impl.1} parent=1 // pred_fallthru
      _
    // Predicated region
    $region38: #{_decode_impl.1} parent=1 // pred_check
      _
    $region39: #{_decode_impl.1} parent=1 // pred_check_branch
      %427 = sbr.rel (0) target = $region41
    $region40: #{_decode_impl.1} parent=1 // pred_region
      _
    $region41: #{_decode_impl.1} parent=1 // pred_fallthru
      _
    %428 = vsyncpa [#allocation4], 1
    %429 = vsyncpa [#allocation7], 1
    %430 = vsyncpa [#allocation5], 1

</llo_original>
